<compile_context>
chip_gen: v7x
topology: tpu7x:2x2x1
jax: 0.10.0
libtpu: 0.0.40
codegen_flags: <defaults>
</compile_context>

<pallas_src>
import math
import functools

import jax
import jax.numpy as jnp
from jax.experimental import pallas as pl
from jax.experimental.pallas import tpu as pltpu

_INV_SQRT2 = 1.0 / math.sqrt(2.0)
_MIB = 1024 * 1024


def _round_up(x, m):
    return ((x + m - 1) // m) * m


def _vmem_budget_bytes():
    """Generation-aware VMEM limit: physical capacity minus compiler headroom."""
    try:
        phys = pltpu.get_tpu_info().vmem_capacity_bytes
    except Exception:
        phys = 64 * _MIB  # conservative fallback: v7x per-TensorCore capacity
    return max(phys - 16 * _MIB, 32 * _MIB)


def _resident_fits(tm, dim_pad, hidden_pad, out_bytes, budget, weight_bufs):
    """Rough VMEM footprint of the weight-resident path."""
    weights = weight_bufs * 2 * dim_pad * hidden_pad * 2           # W1 + W2 (bf16)
    biases = 2 * 2 * (hidden_pad + dim_pad) * 4                    # b1 + b2 (f32, dbl-buffered)
    x_tiles = 2 * tm * dim_pad * 2                                 # x tile, double-buffered bf16
    o_tiles = 2 * tm * dim_pad * out_bytes                         # out tile, double-buffered
    temporaries = tm * hidden_pad * (4 + 2) + tm * dim_pad * 4     # h (f32 + bf16 cast), y (f32)
    return weights + biases + x_tiles + o_tiles + temporaries <= int(0.9 * budget)


# ----------------------------------------------------------------------------- kernels

def _ffn_kernel_resident(x_ref, w1_ref, b1_ref, w2_ref, b2_ref, o_ref):
    # Full hidden dim resident in VMEM: no k-loop, no accumulator scratch.
    # x_ref:  (tm, dim_pad)          bf16
    # w1_ref: (dim_pad, hidden_pad)  bf16 (grid-constant)
    # b1_ref: (1, hidden_pad)        f32
    # w2_ref: (hidden_pad, dim_pad)  bf16 (grid-constant)
    # b2_ref: (1, dim_pad)           f32
    # o_ref:  (tm, dim_pad)
    h = jnp.dot(x_ref[...], w1_ref[...], preferred_element_type=jnp.float32)
    h = h + b1_ref[...]
    # Exact (erf-based) GELU in f32, matching torch.nn.GELU() default.
    h = 0.5 * h * (1.0 + jax.lax.erf(h * _INV_SQRT2))
    # TODO(synk): dropout omitted (p=0.0 / eval mode => identity).
    y = jnp.dot(h.astype(w2_ref.dtype), w2_ref[...],
                preferred_element_type=jnp.float32)
    o_ref[...] = (y + b2_ref[...]).astype(o_ref.dtype)


def _ffn_kernel_streamed(x_ref, w1_ref, b1_ref, w2_ref, b2_ref, o_ref, acc_ref):
    # Fallback when W1/W2 do not fit VMEM: hidden dim streamed over grid axis 1.
    k = pl.program_id(1)

    @pl.when(k == 0)
    def _():
        acc_ref[...] = jnp.zeros_like(acc_ref)

    h = jnp.dot(x_ref[...], w1_ref[...], preferred_element_type=jnp.float32)
    h = h + b1_ref[...]
    h = 0.5 * h * (1.0 + jax.lax.erf(h * _INV_SQRT2))
    # TODO(synk): dropout omitted (p=0.0 / eval mode => identity).
    acc_ref[...] += jnp.dot(h.astype(w2_ref.dtype), w2_ref[...],
                            preferred_element_type=jnp.float32)

    @pl.when(k == pl.num_programs(1) - 1)
    def _():
        o_ref[...] = (acc_ref[...] + b2_ref[...]).astype(o_ref.dtype)


# ----------------------------------------------------------------------------- wrapper

def feed_forward(x, w1, b1, w2, b2, *, tm=512, th=512,
                 compute_dtype=jnp.bfloat16, out_dtype=None,
                 single_buffer_weights=True):
    """x: (batch, seq, dim) -> (batch, seq, dim). Inference-mode ViT FFN."""
    B, S, dim = x.shape
    hidden = w1.shape[1]
    out_dtype = x.dtype if out_dtype is None else out_dtype
    out_bytes = jnp.dtype(out_dtype).itemsize

    M = B * S
    dim_pad = _round_up(dim, 128)
    hidden_pad = _round_up(hidden, 128)
    budget = _vmem_budget_bytes()
    weight_bufs = 1 if single_buffer_weights else 2

    # ---- Row tile selection ------------------------------------------------
    tm = min(tm, _round_up(M, 8))
    # Ensure >=2 parallel row tiles when M allows (v7x has 2 TensorCores per chip).
    if M > 8 and _round_up(M, tm) // tm < 2:
        tm = _round_up(max(8, _round_up(M, 8) // 2), 8)

    # ---- Weight-resident vs hidden-streamed decision -----------------------
    resident = _resident_fits(tm, dim_pad, hidden_pad, out_bytes, budget, weight_bufs)
    if not resident:
        for tm_try in (256, 128):
            if tm_try < tm and _resident_fits(tm_try, dim_pad, hidden_pad,
                                              out_bytes, budget, weight_bufs):
                tm, resident = tm_try, True
                break

    if resident:
        th = hidden_pad
    else:
        th = max(128, _round_up(min(th, hidden_pad), 128))
        hidden_pad = _round_up(hidden_pad, th)

    M_pad = _round_up(M, tm)

    # ---- Pad / cast (skipped when already lane-dense and tile-aligned) -----
    x2 = x.reshape(M, dim)
    if M_pad == M and dim_pad == dim:
        x_p = x2.astype(compute_dtype)
    else:
        x_p = jnp.zeros((M_pad, dim_pad), compute_dtype).at[:M, :dim].set(
            x2.astype(compute_dtype))
    if dim_pad == dim and hidden_pad == hidden:
        w1_p = w1.astype(compute_dtype)
        w2_p = w2.astype(compute_dtype)
        b1_p = b1.astype(jnp.float32).reshape(1, hidden)
        b2_p = b2.astype(jnp.float32).reshape(1, dim)
    else:
        w1_p = jnp.zeros((dim_pad, hidden_pad), compute_dtype).at[:dim, :hidden].set(
            w1.astype(compute_dtype))
        w2_p = jnp.zeros((hidden_pad, dim_pad), compute_dtype).at[:hidden, :dim].set(
            w2.astype(compute_dtype))
        b1_p = jnp.zeros((1, hidden_pad), jnp.float32).at[:, :hidden].set(
            b1.astype(jnp.float32)[None, :])
        b2_p = jnp.zeros((1, dim_pad), jnp.float32).at[:, :dim].set(
            b2.astype(jnp.float32)[None, :])

    if resident:
        if single_buffer_weights:
            # Grid-constant weights: single buffer (no pipelining benefit from 2 copies).
            w1_spec = pl.BlockSpec((dim_pad, hidden_pad), lambda i: (0, 0),
                                   pipeline_mode=pl.Buffered(1))
            w2_spec = pl.BlockSpec((hidden_pad, dim_pad), lambda i: (0, 0),
                                   pipeline_mode=pl.Buffered(1))
        else:
            w1_spec = pl.BlockSpec((dim_pad, hidden_pad), lambda i: (0, 0))
            w2_spec = pl.BlockSpec((hidden_pad, dim_pad), lambda i: (0, 0))

        out = pl.pallas_call(
            _ffn_kernel_resident,
            out_shape=jax.ShapeDtypeStruct((M_pad, dim_pad), out_dtype),
            grid_spec=pltpu.PrefetchScalarGridSpec(
                num_scalar_prefetch=0,
                grid=(M_pad // tm,),
                in_specs=[
                    pl.BlockSpec((tm, dim_pad), lambda i: (i, 0)),      # x rows
                    w1_spec,                                            # W1 (resident)
                    pl.BlockSpec((1, hidden_pad), lambda i: (0, 0)),    # b1
                    w2_spec,                                            # W2 (resident)
                    pl.BlockSpec((1, dim_pad), lambda i: (0, 0)),       # b2
                ],
                out_specs=pl.BlockSpec((tm, dim_pad), lambda i: (i, 0)),
            ),
            compiler_params=pltpu.CompilerParams(
                dimension_semantics=("parallel",),
                vmem_limit_bytes=budget,
            ),
        )(x_p, w1_p, b1_p, w2_p, b2_p)
    else:
        out = pl.pallas_call(
            _ffn_kernel_streamed,
            out_shape=jax.ShapeDtypeStruct((M_pad, dim_pad), out_dtype),
            grid_spec=pltpu.PrefetchScalarGridSpec(
                num_scalar_prefetch=0,
                grid=(M_pad // tm, hidden_pad // th),
                in_specs=[
                    pl.BlockSpec((tm, dim_pad), lambda i, k: (i, 0)),   # x rows (resident over k)
                    pl.BlockSpec((dim_pad, th), lambda i, k: (0, k)),   # W1 hidden tile
                    pl.BlockSpec((1, th), lambda i, k: (0, k)),         # b1 hidden tile
                    pl.BlockSpec((th, dim_pad), lambda i, k: (k, 0)),   # W2 hidden tile
                    pl.BlockSpec((1, dim_pad), lambda i, k: (0, 0)),    # b2 (constant)
                ],
                out_specs=pl.BlockSpec((tm, dim_pad), lambda i, k: (i, 0)),
                scratch_shapes=[pltpu.VMEM((tm, dim_pad), jnp.float32)],
            ),
            compiler_params=pltpu.CompilerParams(
                dimension_semantics=("parallel", "arbitrary"),
                vmem_limit_bytes=budget,
            ),
        )(x_p, w1_p, b1_p, w2_p, b2_p)

    if M_pad == M and dim_pad == dim:
        return out.reshape(B, S, dim)
    return out[:M, :dim].reshape(B, S, dim)


def _ref_feed_forward(x, w1, b1, w2, b2):
    h = jnp.dot(x, w1) + b1
    h = 0.5 * h * (1.0 + jax.lax.erf(h * _INV_SQRT2))
    return jnp.dot(h, w2) + b2


if __name__ == "__main__":
    # Small shapes consistent with a ViT token FFN.
    batch, seq, dim, hidden = 2, 8, 32, 64

    key = jax.random.PRNGKey(0)
    kx, k1, kb1, k2, kb2 = jax.random.split(key, 5)

    x = jax.random.normal(kx, (batch, seq, dim), dtype=jnp.float32)

    # Deterministic param init (PyTorch Linear-style uniform bounds).
    bound1 = 1.0 / math.sqrt(dim)
    w1 = jax.random.uniform(k1, (dim, hidden), jnp.float32, -bound1, bound1)
    b1 = jax.random.uniform(kb1, (hidden,), jnp.float32, -bound1, bound1)
    bound2 = 1.0 / math.sqrt(hidden)
    w2 = jax.random.uniform(k2, (hidden, dim), jnp.float32, -bound2, bound2)
    b2 = jax.random.uniform(kb2, (dim,), jnp.float32, -bound2, bound2)

    def _run(single_buffer):
        ffn = jax.jit(functools.partial(feed_forward,
                                        single_buffer_weights=single_buffer))
        out = ffn(x, w1, b1, w2, b2)
        jax.block_until_ready(out)
        return out

    try:
        out = _run(True)
    except Exception:
        # Safety net if this JAX build rejects single-buffered (Buffered(1)) weight specs.
        out = _run(False)

    ref = _ref_feed_forward(x, w1, b1, w2, b2)
    assert out.shape == (batch, seq, dim)
    # bf16 matmul inputs (f32 accumulation) => loosened tolerances vs the f32 reference.
    assert jnp.allclose(out, ref, atol=5e-2, rtol=5e-2), (
        "mismatch vs reference, max abs diff = %f"
        % float(jnp.max(jnp.abs(out - ref))))

    print("KERNEL_OK")
</pallas_src>

<mosaic_0001>
module attributes {stable_mosaic.version = 11 : i64} {
  func.func @_ffn_kernel_resident(%arg0: i32, %arg1: memref<8x128xbf16, #tpu.memory_space<vmem>>, %arg2: memref<128x128xbf16, #tpu.memory_space<vmem>>, %arg3: memref<1x128xf32, #tpu.memory_space<vmem>>, %arg4: memref<128x128xbf16, #tpu.memory_space<vmem>>, %arg5: memref<1x128xf32, #tpu.memory_space<vmem>>, %arg6: memref<8x128xf32, #tpu.memory_space<vmem>>) attributes {dimension_semantics = [#tpu.dimension_semantics<parallel>], iteration_bounds = array<i64: 2>, scalar_prefetch = 0 : i64, scratch_operands = 0 : i64, tpu.core_type = #tpu.core_type<tc>, window_params = [{transform_indices = @transform_0, window_bounds = array<i64: 8, 128>}, {pipeline_mode = #tpu.pipeline_mode<synchronous>, transform_indices = @transform_1, window_bounds = array<i64: 128, 128>}, {pipeline_mode = #tpu.pipeline_mode<synchronous>, transform_indices = @transform_2, window_bounds = array<i64: 1, 128>}, {pipeline_mode = #tpu.pipeline_mode<synchronous>, transform_indices = @transform_3, window_bounds = array<i64: 128, 128>}, {pipeline_mode = #tpu.pipeline_mode<synchronous>, transform_indices = @transform_4, window_bounds = array<i64: 1, 128>}, {transform_indices = @transform_5, window_bounds = array<i64: 8, 128>}]} {
    %c0 = arith.constant 0 : index
    %c0_0 = arith.constant 0 : index
    %0 = vector.load %arg1[%c0, %c0_0] : memref<8x128xbf16, #tpu.memory_space<vmem>>, vector<8x128xbf16>
    %c0_1 = arith.constant 0 : index
    %c0_2 = arith.constant 0 : index
    %1 = vector.load %arg2[%c0_1, %c0_2] : memref<128x128xbf16, #tpu.memory_space<vmem>>, vector<128x128xbf16>
    %cst = arith.constant dense<0.000000e+00> : vector<8x128xf32>
    %2 = tpu.matmul %0, %1, %cst {dimension_numbers = #tpu.dot_dimension_numbers<[1], [0], [0], [1], [0, 0, 1, 1], [], []>} : vector<8x128xbf16>, vector<128x128xbf16>, vector<8x128xf32> -> vector<8x128xf32>
    %c0_3 = arith.constant 0 : index
    %c0_4 = arith.constant 0 : index
    %3 = vector.load %arg3[%c0_3, %c0_4] : memref<1x128xf32, #tpu.memory_space<vmem>>, vector<1x128xf32>
    %4 = vector.broadcast %3 : vector<1x128xf32> to vector<8x128xf32>
    %5 = arith.addf %2, %4 : vector<8x128xf32>
    %cst_5 = arith.constant 5.000000e-01 : f32
    %6 = vector.broadcast %cst_5 : f32 to vector<8x128xf32>
    %7 = arith.mulf %6, %5 : vector<8x128xf32>
    %cst_6 = arith.constant 0.707106769 : f32
    %8 = vector.broadcast %cst_6 : f32 to vector<8x128xf32>
    %9 = arith.mulf %5, %8 : vector<8x128xf32>
    %10 = math.erf %9 : vector<8x128xf32>
    %cst_7 = arith.constant 1.000000e+00 : f32
    %11 = vector.broadcast %cst_7 : f32 to vector<8x128xf32>
    %12 = arith.addf %11, %10 : vector<8x128xf32>
    %13 = arith.mulf %7, %12 : vector<8x128xf32>
    %14 = arith.truncf %13 : vector<8x128xf32> to vector<8x128xbf16>
    %c0_8 = arith.constant 0 : index
    %c0_9 = arith.constant 0 : index
    %15 = vector.load %arg4[%c0_8, %c0_9] : memref<128x128xbf16, #tpu.memory_space<vmem>>, vector<128x128xbf16>
    %cst_10 = arith.constant dense<0.000000e+00> : vector<8x128xf32>
    %16 = tpu.matmul %14, %15, %cst_10 {dimension_numbers = #tpu.dot_dimension_numbers<[1], [0], [0], [1], [0, 0, 1, 1], [], []>} : vector<8x128xbf16>, vector<128x128xbf16>, vector<8x128xf32> -> vector<8x128xf32>
    %c0_11 = arith.constant 0 : index
    %c0_12 = arith.constant 0 : index
    %17 = vector.load %arg5[%c0_11, %c0_12] : memref<1x128xf32, #tpu.memory_space<vmem>>, vector<1x128xf32>
    %18 = vector.broadcast %17 : vector<1x128xf32> to vector<8x128xf32>
    %19 = arith.addf %16, %18 : vector<8x128xf32>
    %c0_13 = arith.constant 0 : index
    %c0_14 = arith.constant 0 : index
    %20 = vector.load %arg6[%c0_13, %c0_14] : memref<8x128xf32, #tpu.memory_space<vmem>>, vector<8x128xf32>
    tpu.vector_store %arg6[%c0_13, %c0_14], %19 {strides = array<i32>} : memref<8x128xf32, #tpu.memory_space<vmem>>, vector<8x128xf32>,
    return
  }
  func.func @transform_0(%arg0: i32) -> (i32, i32) {
    %c0_i32 = arith.constant 0 : i32
    %c0_i32_0 = arith.constant 0 : i32
    return %arg0, %c0_i32 : i32, i32
  }
  func.func @transform_1(%arg0: i32) -> (i32, i32) {
    %c0_i32 = arith.constant 0 : i32
    %c0_i32_0 = arith.constant 0 : i32
    %c0_i32_1 = arith.constant 0 : i32
    return %c0_i32, %c0_i32_0 : i32, i32
  }
  func.func @transform_2(%arg0: i32) -> (i32, i32) {
    %c0_i32 = arith.constant 0 : i32
    %c0_i32_0 = arith.constant 0 : i32
    %c0_i32_1 = arith.constant 0 : i32
    return %c0_i32, %c0_i32_0 : i32, i32
  }
  func.func @transform_3(%arg0: i32) -> (i32, i32) {
    %c0_i32 = arith.constant 0 : i32
    %c0_i32_0 = arith.constant 0 : i32
    %c0_i32_1 = arith.constant 0 : i32
    return %c0_i32, %c0_i32_0 : i32, i32
  }
  func.func @transform_4(%arg0: i32) -> (i32, i32) {
    %c0_i32 = arith.constant 0 : i32
    %c0_i32_0 = arith.constant 0 : i32
    %c0_i32_1 = arith.constant 0 : i32
    return %c0_i32, %c0_i32_0 : i32, i32
  }
  func.func @transform_5(%arg0: i32) -> (i32, i32) {
    %c0_i32 = arith.constant 0 : i32
    %c0_i32_0 = arith.constant 0 : i32
    return %arg0, %c0_i32 : i32, i32
  }
}

module attributes {stable_mosaic.version = 11 : i64} {
  func.func @_ffn_kernel_resident(%arg0: i32, %arg1: memref<8x128xbf16, #tpu.memory_space<vmem>>, %arg2: memref<128x128xbf16, #tpu.memory_space<vmem>>, %arg3: memref<1x128xf32, #tpu.memory_space<vmem>>, %arg4: memref<128x128xbf16, #tpu.memory_space<vmem>>, %arg5: memref<1x128xf32, #tpu.memory_space<vmem>>, %arg6: memref<8x128xf32, #tpu.memory_space<vmem>>) attributes {dimension_semantics = [#tpu.dimension_semantics<parallel>], iteration_bounds = array<i64: 2>, scalar_prefetch = 0 : i64, scratch_operands = 0 : i64, tpu.core_type = #tpu.core_type<tc>, window_params = [{transform_indices = @transform_0, window_bounds = array<i64: 8, 128>}, {pipeline_mode = #tpu.pipeline_mode<synchronous>, transform_indices = @transform_1, window_bounds = array<i64: 128, 128>}, {pipeline_mode = #tpu.pipeline_mode<synchronous>, transform_indices = @transform_2, window_bounds = array<i64: 1, 128>}, {pipeline_mode = #tpu.pipeline_mode<synchronous>, transform_indices = @transform_3, window_bounds = array<i64: 128, 128>}, {pipeline_mode = #tpu.pipeline_mode<synchronous>, transform_indices = @transform_4, window_bounds = array<i64: 1, 128>}, {transform_indices = @transform_5, window_bounds = array<i64: 8, 128>}]} {
    %c0 = arith.constant 0 : index
    %c0_0 = arith.constant 0 : index
    %0 = vector.load %arg1[%c0, %c0_0] : memref<8x128xbf16, #tpu.memory_space<vmem>>, vector<8x128xbf16>
    %c0_1 = arith.constant 0 : index
    %c0_2 = arith.constant 0 : index
    %1 = vector.load %arg2[%c0_1, %c0_2] : memref<128x128xbf16, #tpu.memory_space<vmem>>, vector<128x128xbf16>
    %cst = arith.constant dense<0.000000e+00> : vector<8x128xf32>
    %2 = tpu.matmul %0, %1, %cst {dimension_numbers = #tpu.dot_dimension_numbers<[1], [0], [0], [1], [0, 0, 1, 1], [], []>} : vector<8x128xbf16>, vector<128x128xbf16>, vector<8x128xf32> -> vector<8x128xf32>
    %c0_3 = arith.constant 0 : index
    %c0_4 = arith.constant 0 : index
    %3 = vector.load %arg3[%c0_3, %c0_4] : memref<1x128xf32, #tpu.memory_space<vmem>>, vector<1x128xf32>
    %4 = vector.broadcast %3 : vector<1x128xf32> to vector<8x128xf32>
    %5 = arith.addf %2, %4 : vector<8x128xf32>
    %cst_5 = arith.constant 5.000000e-01 : f32
    %6 = vector.broadcast %cst_5 : f32 to vector<8x128xf32>
    %7 = arith.mulf %6, %5 : vector<8x128xf32>
    %cst_6 = arith.constant 0.707106769 : f32
    %8 = vector.broadcast %cst_6 : f32 to vector<8x128xf32>
    %9 = arith.mulf %5, %8 : vector<8x128xf32>
    %10 = math.erf %9 : vector<8x128xf32>
    %cst_7 = arith.constant 1.000000e+00 : f32
    %11 = vector.broadcast %cst_7 : f32 to vector<8x128xf32>
    %12 = arith.addf %11, %10 : vector<8x128xf32>
    %13 = arith.mulf %7, %12 : vector<8x128xf32>
    %14 = arith.truncf %13 : vector<8x128xf32> to vector<8x128xbf16>
    %c0_8 = arith.constant 0 : index
    %c0_9 = arith.constant 0 : index
    %15 = vector.load %arg4[%c0_8, %c0_9] : memref<128x128xbf16, #tpu.memory_space<vmem>>, vector<128x128xbf16>
    %cst_10 = arith.constant dense<0.000000e+00> : vector<8x128xf32>
    %16 = tpu.matmul %14, %15, %cst_10 {dimension_numbers = #tpu.dot_dimension_numbers<[1], [0], [0], [1], [0, 0, 1, 1], [], []>} : vector<8x128xbf16>, vector<128x128xbf16>, vector<8x128xf32> -> vector<8x128xf32>
    %c0_11 = arith.constant 0 : index
    %c0_12 = arith.constant 0 : index
    %17 = vector.load %arg5[%c0_11, %c0_12] : memref<1x128xf32, #tpu.memory_space<vmem>>, vector<1x128xf32>
    %18 = vector.broadcast %17 : vector<1x128xf32> to vector<8x128xf32>
    %19 = arith.addf %16, %18 : vector<8x128xf32>
    %c0_13 = arith.constant 0 : index
    %c0_14 = arith.constant 0 : index
    %20 = vector.load %arg6[%c0_13, %c0_14] : memref<8x128xf32, #tpu.memory_space<vmem>>, vector<8x128xf32>
    tpu.vector_store %arg6[%c0_13, %c0_14], %19 {strides = array<i32>} : memref<8x128xf32, #tpu.memory_space<vmem>>, vector<8x128xf32>,
    return
  }
  func.func @transform_0(%arg0: i32) -> (i32, i32) {
    %c0_i32 = arith.constant 0 : i32
    %c0_i32_0 = arith.constant 0 : i32
    return %arg0, %c0_i32 : i32, i32
  }
  func.func @transform_1(%arg0: i32) -> (i32, i32) {
    %c0_i32 = arith.constant 0 : i32
    %c0_i32_0 = arith.constant 0 : i32
    %c0_i32_1 = arith.constant 0 : i32
    return %c0_i32, %c0_i32_0 : i32, i32
  }
  func.func @transform_2(%arg0: i32) -> (i32, i32) {
    %c0_i32 = arith.constant 0 : i32
    %c0_i32_0 = arith.constant 0 : i32
    %c0_i32_1 = arith.constant 0 : i32
    return %c0_i32, %c0_i32_0 : i32, i32
  }
  func.func @transform_3(%arg0: i32) -> (i32, i32) {
    %c0_i32 = arith.constant 0 : i32
    %c0_i32_0 = arith.constant 0 : i32
    %c0_i32_1 = arith.constant 0 : i32
    return %c0_i32, %c0_i32_0 : i32, i32
  }
  func.func @transform_4(%arg0: i32) -> (i32, i32) {
    %c0_i32 = arith.constant 0 : i32
    %c0_i32_0 = arith.constant 0 : i32
    %c0_i32_1 = arith.constant 0 : i32
    return %c0_i32, %c0_i32_0 : i32, i32
  }
  func.func @transform_5(%arg0: i32) -> (i32, i32) {
    %c0_i32 = arith.constant 0 : i32
    %c0_i32_0 = arith.constant 0 : i32
    return %arg0, %c0_i32 : i32, i32
  }
}

</mosaic_0001>

<llo_original>
// kernel: feed_forward.1
$region0: #{feed_forward.1}
  #allocation0 [shape = 'u32[]', space=smem, size = 0x4, offset = 0x4, fixed_abs, tag = 'smem constant byte address 0x4 - core index']
  #allocation1 [shape = 'u32[144,128]{1,0:T(1,128)}', space=vmem, size = 0x12000, scoped, tag = 'internal scratch']
  %s0 = inlined_call_operand.vmem [shape: bf16[16,128], index: 0, kind: input, shape index: {}]
  %s1 = inlined_call_operand.vmem [shape: bf16[128,128], index: 1, kind: input, shape index: {}]
  %s2 = inlined_call_operand.vmem [shape: f32[1,128], index: 2, kind: input, shape index: {}]
  %s3 = inlined_call_operand.vmem [shape: bf16[128,128], index: 3, kind: input, shape index: {}]
  %s4 = inlined_call_operand.vmem [shape: f32[1,128], index: 4, kind: input, shape index: {}]
  %s5 = inlined_call_operand.vmem [shape: f32[16,128], index: 5, kind: output, shape index: {}]
  %s6 = sld [smem:[#allocation0]]
  $region53: #{feed_forward.1} parent=0
    _
  %s8 = ssub.s32 1, %s6
  %s9 = scalar_select 0, %s8, %s6
  loop: start=0, step=1, limit=4
  $region2: #{feed_forward.1} parent=0 // loop_pre_header
    _
  $region3: #{feed_forward.1} parent=0 // loop_header
    %s11 = sphi 0, %s15
    %p12 = scmp.ge.s32.totalorder %s11, 4
    %s21 = sphi 0, %s23
    %s24 = sphi 0, %s21
    %s25 = sphi 0, %s24
    %s41 = sphi 0, %s25
    %s45 = sphi 0, %s45
    %s47 = sphi 0, %s45
    %s48 = sphi 0, %s47
    %s62 = sphi 0, %s48
    %s66 = sphi 0, %s66
    %s68 = sphi 0, %s66
    %s69 = sphi 0, %s68
    %s83 = sphi 0, %s69
    %s87 = sphi 0, %s87
    %s89 = sphi 0, %s87
    %s90 = sphi 0, %s89
    %s104 = sphi 0, %s90
    %s108 = sphi 0, %s108
    %s110 = sphi 0, %s108
    %s111 = sphi 0, %s110
    %s125 = sphi 0, %s111
    %s131 = sphi 0, %s133
    %s134 = sphi 0, %s131
    %s135 = sphi 0, %s134
    %s151 = sphi 0, %s135
  $region4: #{feed_forward.1} parent=0 // loop_header_branch
    %14 = sbr.rel (%p12) target = $region8
  $region5: #{feed_forward.1} parent=0 // loop_body
    %s16 = ssub.s32 %s11, 1
    %s17 = ssub.s32 %s11, 2
    %s18 = sadd.s32 %s11, 1
    %s19 = ssub.s32 %s11, %s18
    %p20 = scmp.eq.s32.totalorder %s19, 0
    %s22 = sadd.s32 %s21, 1
    %s23 = scalar_select %p20, %s21, %s22
    %p26 = pneg %p20
    %p27 = scmp.eq.s32.totalorder %s11, 1
    %p28 = por %p26, %p27
    %p29 = scmp.ne.s32.totalorder %s21, %s24
    %p30 = scmp.eq.s32.totalorder %s11, 0
    %p31 = por %p29, %p30
    %p32 = scmp.ne.s32.totalorder %s21, %s24
    %p33 = scmp.eq.s32.totalorder %s16, 1
    %p34 = por %p32, %p33
    %p35 = scmp.ne.s32.totalorder %s24, %s25
    %p36 = scmp.eq.s32.totalorder %s16, 0
    %p37 = por %p35, %p36
    %p38 = scmp.ne.s32.totalorder %s24, %s25
    %p39 = scmp.eq.s32.totalorder %s17, 1
    %p40 = por %p38, %p39
    %p42 = scmp.ne.s32.totalorder %s25, %s41
    %p43 = scmp.eq.s32.totalorder %s17, 0
    %p44 = por %p42, %p43
    %s46 = sadd.s32 %s45, 1
    %p49 = scmp.eq.s32.totalorder %s11, 1
    %p50 = scmp.ne.s32.totalorder %s45, %s47
    %p51 = scmp.eq.s32.totalorder %s11, 0
    %p52 = por %p50, %p51
    %p53 = scmp.ne.s32.totalorder %s45, %s47
    %p54 = scmp.eq.s32.totalorder %s16, 1
    %p55 = por %p53, %p54
    %p56 = scmp.ne.s32.totalorder %s47, %s48
    %p57 = scmp.eq.s32.totalorder %s16, 0
    %p58 = por %p56, %p57
    %p59 = scmp.ne.s32.totalorder %s47, %s48
    %p60 = scmp.eq.s32.totalorder %s17, 1
    %p61 = por %p59, %p60
    %p63 = scmp.ne.s32.totalorder %s48, %s62
    %p64 = scmp.eq.s32.totalorder %s17, 0
    %p65 = por %p63, %p64
    %s67 = sadd.s32 %s66, 1
    %p70 = scmp.eq.s32.totalorder %s11, 1
    %p71 = scmp.ne.s32.totalorder %s66, %s68
    %p72 = scmp.eq.s32.totalorder %s11, 0
    %p73 = por %p71, %p72
    %p74 = scmp.ne.s32.totalorder %s66, %s68
    %p75 = scmp.eq.s32.totalorder %s16, 1
    %p76 = por %p74, %p75
    %p77 = scmp.ne.s32.totalorder %s68, %s69
    %p78 = scmp.eq.s32.totalorder %s16, 0
    %p79 = por %p77, %p78
    %p80 = scmp.ne.s32.totalorder %s68, %s69
    %p81 = scmp.eq.s32.totalorder %s17, 1
    %p82 = por %p80, %p81
    %p84 = scmp.ne.s32.totalorder %s69, %s83
    %p85 = scmp.eq.s32.totalorder %s17, 0
    %p86 = por %p84, %p85
    %s88 = sadd.s32 %s87, 1
    %p91 = scmp.eq.s32.totalorder %s11, 1
    %p92 = scmp.ne.s32.totalorder %s87, %s89
    %p93 = scmp.eq.s32.totalorder %s11, 0
    %p94 = por %p92, %p93
    %p95 = scmp.ne.s32.totalorder %s87, %s89
    %p96 = scmp.eq.s32.totalorder %s16, 1
    %p97 = por %p95, %p96
    %p98 = scmp.ne.s32.totalorder %s89, %s90
    %p99 = scmp.eq.s32.totalorder %s16, 0
    %p100 = por %p98, %p99
    %p101 = scmp.ne.s32.totalorder %s89, %s90
    %p102 = scmp.eq.s32.totalorder %s17, 1
    %p103 = por %p101, %p102
    %p105 = scmp.ne.s32.totalorder %s90, %s104
    %p106 = scmp.eq.s32.totalorder %s17, 0
    %p107 = por %p105, %p106
    %s109 = sadd.s32 %s108, 1
    %p112 = scmp.eq.s32.totalorder %s11, 1
    %p113 = scmp.ne.s32.totalorder %s108, %s110
    %p114 = scmp.eq.s32.totalorder %s11, 0
    %p115 = por %p113, %p114
    %p116 = scmp.ne.s32.totalorder %s108, %s110
    %p117 = scmp.eq.s32.totalorder %s16, 1
    %p118 = por %p116, %p117
    %p119 = scmp.ne.s32.totalorder %s110, %s111
    %p120 = scmp.eq.s32.totalorder %s16, 0
    %p121 = por %p119, %p120
    %p122 = scmp.ne.s32.totalorder %s110, %s111
    %p123 = scmp.eq.s32.totalorder %s17, 1
    %p124 = por %p122, %p123
    %p126 = scmp.ne.s32.totalorder %s111, %s125
    %p127 = scmp.eq.s32.totalorder %s17, 0
    %p128 = por %p126, %p127
    %s129 = ssub.s32 %s11, %s18
    %p130 = scmp.eq.s32.totalorder %s129, 0
    %s132 = sadd.s32 %s131, 1
    %s133 = scalar_select %p130, %s131, %s132
    %p136 = pneg %p130
    %p137 = scmp.eq.s32.totalorder %s11, 1
    %p138 = por %p136, %p137
    %p139 = scmp.ne.s32.totalorder %s131, %s134
    %p140 = scmp.eq.s32.totalorder %s11, 0
    %p141 = por %p139, %p140
    %p142 = scmp.ne.s32.totalorder %s131, %s134
    %p143 = scmp.eq.s32.totalorder %s16, 1
    %p144 = por %p142, %p143
    %p145 = scmp.ne.s32.totalorder %s134, %s135
    %p146 = scmp.eq.s32.totalorder %s16, 0
    %p147 = por %p145, %p146
    %p148 = scmp.ne.s32.totalorder %s134, %s135
    %p149 = scmp.eq.s32.totalorder %s17, 1
    %p150 = por %p148, %p149
    %p152 = scmp.ne.s32.totalorder %s135, %s151
    %p153 = scmp.eq.s32.totalorder %s17, 0
    %p154 = por %p152, %p153
    %p155 = scmp.le.s32.totalorder 1, %s11
    %p156 = scmp.lt.s32.totalorder %s11, 3
    %p157 = pnand %p155, %p156
    %p158 = pneg %p157
    // Predicated region
    $region9: #{feed_forward.1} parent=5 // pred_check
      _
    $region10: #{feed_forward.1} parent=5 // pred_check_branch
      %160 = sbr.rel (%p157) target = $region12
    $region11: #{feed_forward.1} parent=5 // pred_region
      %s161 = ssub.s32 %s11, 1
      // Predicated region
      $region13: #{feed_forward.1} parent=11 // pred_check
        %p162 = pneg %p58
      $region14: #{feed_forward.1} parent=11 // pred_check_branch
        %164 = sbr.rel (%p162) target = $region16
      $region15: #{feed_forward.1} parent=11 // pred_region
        _
      $region16: #{feed_forward.1} parent=11 // pred_fallthru
        _
      // Predicated region
      $region17: #{feed_forward.1} parent=11 // pred_check
        %p165 = pneg %p79
      $region18: #{feed_forward.1} parent=11 // pred_check_branch
        %167 = sbr.rel (%p165) target = $region20
      $region19: #{feed_forward.1} parent=11 // pred_region
        _
      $region20: #{feed_forward.1} parent=11 // pred_fallthru
        _
      // Predicated region
      $region21: #{feed_forward.1} parent=11 // pred_check
        %p168 = pneg %p100
      $region22: #{feed_forward.1} parent=11 // pred_check_branch
        %170 = sbr.rel (%p168) target = $region24
      $region23: #{feed_forward.1} parent=11 // pred_region
        _
      $region24: #{feed_forward.1} parent=11 // pred_fallthru
        _
      // Predicated region
      $region25: #{feed_forward.1} parent=11 // pred_check
        %p171 = pneg %p121
      $region26: #{feed_forward.1} parent=11 // pred_check_branch
        %173 = sbr.rel (%p171) target = $region28
      $region27: #{feed_forward.1} parent=11 // pred_region
        _
      $region28: #{feed_forward.1} parent=11 // pred_fallthru
        _
    $region12: #{feed_forward.1} parent=5 // pred_fallthru
      _
    %p174 = scmp.lt.s32.totalorder %s11, 2
    // Predicated region
    $region29: #{feed_forward.1} parent=5 // pred_check
      %p175 = pneg %p174
    $region30: #{feed_forward.1} parent=5 // pred_check_branch
      %177 = sbr.rel (%p175) target = $region32
    $region31: #{feed_forward.1} parent=5 // pred_region
      // Predicated region
      $region33: #{feed_forward.1} parent=31 // pred_check
        %p178 = pneg %p31
      $region34: #{feed_forward.1} parent=31 // pred_check_branch
        %180 = sbr.rel (%p178) target = $region36
      $region35: #{feed_forward.1} parent=31 // pred_region
        %p181 = scmp.lt.s32.totalorder %s11, 1
        %s182 = scalar_select %p181, %s11, 1
        %s183 = smul.addr %s182, 4
        %s184 = scalar_lea.vmem %s0, %s183
      $region36: #{feed_forward.1} parent=31 // pred_fallthru
        _
    $region32: #{feed_forward.1} parent=5 // pred_fallthru
      _
    %p185 = scmp.le.s32.totalorder 1, %s11
    %p186 = scmp.lt.s32.totalorder %s11, 3
    %p187 = pnand %p185, %p186
    %p188 = pneg %p187
    // Predicated region
    $region37: #{feed_forward.1} parent=5 // pred_check
      _
    $region38: #{feed_forward.1} parent=5 // pred_check_branch
      %190 = sbr.rel (%p187) target = $region40
    $region39: #{feed_forward.1} parent=5 // pred_region
      %s191 = ssub.s32 %s11, 1
      %p192 = scmp.lt.s32.totalorder %s16, 1
      %s193 = scalar_select %p192, %s16, 1
      %s194 = smul.addr %s193, 4
      %s195 = scalar_lea.vmem %s0, %s194
      %p196 = pneg %p37
      %p197 = pneg %p34
      %p198 = pneg %p58
      %p199 = pneg %p55
      %p200 = pneg %p79
      %p201 = pneg %p76
      %p202 = pneg %p100
      %p203 = pneg %p97
      %p204 = pneg %p121
      %p205 = pneg %p118
      %p206 = pneg %p147
      %p207 = pneg %p144
      %p208 = scmp.lt.s32.totalorder %s16, 1
      %s209 = scalar_select %p208, %s16, 1
      %s210 = smul.addr %s209, 8
      %s211 = scalar_lea.vmem %s5, %s210
      %p212 = scmp.lt.s32.totalorder %s16, 1
      %s213 = scalar_select %p212, %s16, 1
      %s214 = smul.addr %s213, 4
      %s215 = scalar_lea.vmem %s0, %s214
      %p216 = scmp.lt.s32.totalorder %s16, 1
      %s217 = scalar_select %p216, %s16, 1
      %s218 = smul.addr %s217, 8
      %s219 = scalar_lea.vmem %s5, %s218
      %v221 = vld [vmem:[%s215] sm:$0xf]
      %v222 = vld [vmem:[%s1] sm:$0xf]
      %v223 = vld [vmem:[%s1 + $0x4] sm:$0xf]
      %v224 = vld [vmem:[%s1 + $0x8] sm:$0xf]
      %v225 = vld [vmem:[%s1 + $0xc] sm:$0xf]
      %v226 = vld [vmem:[%s1 + $0x10] sm:$0xf]
      %v227 = vld [vmem:[%s1 + $0x14] sm:$0xf]
      %v228 = vld [vmem:[%s1 + $0x18] sm:$0xf]
      %v229 = vld [vmem:[%s1 + $0x1c] sm:$0xf]
      %v230 = vld [vmem:[%s1 + $0x20] sm:$0xf]
      %v231 = vld [vmem:[%s1 + $0x24] sm:$0xf]
      %v232 = vld [vmem:[%s1 + $0x28] sm:$0xf]
      %v233 = vld [vmem:[%s1 + $0x2c] sm:$0xf]
      %v234 = vld [vmem:[%s1 + $0x30] sm:$0xf]
      %v235 = vld [vmem:[%s1 + $0x34] sm:$0xf]
      %v236 = vld [vmem:[%s1 + $0x38] sm:$0xf]
      %v237 = vld [vmem:[%s1 + $0x3c] sm:$0xf]
      %v238 = vld [vmem:[%s2] sm:$0x1]
      %v240 = vlaneseq
      %v241 = vshrl.u32 %v240, 7
      %v242 = vsub.s32 0, %v241
      %v243 = vrot.slane %v238, %v242
      %v261 = vunpack.c.l.b16 %v222
      %v262 = vunpack.c.l.b16 %v223
      %v263 = vunpack.c.l.b16 %v224
      %v264 = vunpack.c.l.b16 %v225
      %v265 = vunpack.c.l.b16 %v226
      %v266 = vunpack.c.l.b16 %v227
      %v267 = vunpack.c.l.b16 %v228
      %v268 = vunpack.c.l.b16 %v229
      %v269 = vunpack.c.l.b16 %v230
      %v270 = vunpack.c.l.b16 %v231
      %v271 = vunpack.c.l.b16 %v232
      %v272 = vunpack.c.l.b16 %v233
      %v273 = vunpack.c.l.b16 %v234
      %v274 = vunpack.c.l.b16 %v235
      %v275 = vunpack.c.l.b16 %v236
      %v276 = vunpack.c.l.b16 %v237
      %v277 = vpack.c.b16 %v262, %v261
      %v278 = vpack.c.b16 %v264, %v263
      %v279 = vpack.c.b16 %v266, %v265
      %v280 = vpack.c.b16 %v268, %v267
      %v281 = vpack.c.b16 %v270, %v269
      %v282 = vpack.c.b16 %v272, %v271
      %v283 = vpack.c.b16 %v274, %v273
      %v284 = vpack.c.b16 %v276, %v275
      %293 = vmatprep.subr.bf16.mxu0 0
      %294 = vmatpush1.bf16.msra.mxu0 %v277
      %295 = vmatprep.subr.bf16.mxu0 0
      %296 = vmatpush1.bf16.msra.mxu0 %v278
      %297 = vmatprep.subr.bf16.mxu0 0
      %298 = vmatpush1.bf16.msra.mxu0 %v279
      %299 = vmatprep.subr.bf16.mxu0 0
      %300 = vmatpush1.bf16.msra.mxu0 %v280
      %301 = vmatprep.subr.bf16.mxu0 0
      %302 = vmatpush1.bf16.msra.mxu0 %v281
      %303 = vmatprep.subr.bf16.mxu0 0
      %304 = vmatpush1.bf16.msra.mxu0 %v282
      %305 = vmatprep.subr.bf16.mxu0 0
      %306 = vmatpush1.bf16.msra.mxu0 %v283
      %307 = vmatprep.subr.bf16.mxu0 0
      %308 = vmatpush1.bf16.msra.mxu0 %v284
      %309 = vmatprep.subr.bf16.mxu0 0
      %310 = vmatpush1.bf16.msra.mxu0 0
      %311 = vmatprep.subr.bf16.mxu0 0
      %312 = vmatpush1.bf16.msra.mxu0 0
      %313 = vmatprep.subr.bf16.mxu0 0
      %314 = vmatpush1.bf16.msra.mxu0 0
      %315 = vmatprep.subr.bf16.mxu0 0
      %316 = vmatpush1.bf16.msra.mxu0 0
      %317 = vmatprep.subr.bf16.mxu0 0
      %318 = vmatpush1.bf16.msra.mxu0 0
      %319 = vmatprep.subr.bf16.mxu0 0
      %320 = vmatpush1.bf16.msra.mxu0 0
      %321 = vmatprep.subr.bf16.mxu0 0
      %322 = vmatpush1.bf16.msra.mxu0 0
      %323 = vmatprep.subr.bf16.mxu0 0
      %324 = vmatpush1.bf16.msra.mxu0 0
      %325 = vmatprep.mubr.bf16.mxu0 0
      %326 = vmatmul.mubr.bf16.gmra.mrb[0].mxu0 %v221
      %v327 = vpop.f32.mrb[0].mxu0
      %v328 = vadd.f32 %v243, %v327
      %v329 = vpop.f32.mrb[0].mxu0
      %v330 = vpop.f32.mrb[0].mxu0
      %v331 = vpop.f32.mrb[0].mxu0
      %332 = vdwg.mxu0
      %v333 = vmul.f32 %v328, 0.5
      %v334 = vmul.f32 %v328, 0.70710677
      %v335 = verf.f32.pop %v334
      %v336 = vadd.f32 %v335, 1.0
      %v337 = vmul.f32 %v333, %v336
      %v338 = vpack.c.bf16 %v337, %v337
      %v339 = vld [vmem:[%s3] sm:$0xf]
      %v340 = vld [vmem:[%s3 + $0x4] sm:$0xf]
      %v341 = vld [vmem:[%s3 + $0x8] sm:$0xf]
      %v342 = vld [vmem:[%s3 + $0xc] sm:$0xf]
      %v343 = vld [vmem:[%s3 + $0x10] sm:$0xf]
      %v344 = vld [vmem:[%s3 + $0x14] sm:$0xf]
      %v345 = vld [vmem:[%s3 + $0x18] sm:$0xf]
      %v346 = vld [vmem:[%s3 + $0x1c] sm:$0xf]
      %v347 = vld [vmem:[%s3 + $0x20] sm:$0xf]
      %v348 = vld [vmem:[%s3 + $0x24] sm:$0xf]
      %v349 = vld [vmem:[%s3 + $0x28] sm:$0xf]
      %v350 = vld [vmem:[%s3 + $0x2c] sm:$0xf]
      %v351 = vld [vmem:[%s3 + $0x30] sm:$0xf]
      %v352 = vld [vmem:[%s3 + $0x34] sm:$0xf]
      %v353 = vld [vmem:[%s3 + $0x38] sm:$0xf]
      %v354 = vld [vmem:[%s3 + $0x3c] sm:$0xf]
      %v355 = vld [vmem:[%s4] sm:$0x1]
      %v357 = vlaneseq
      %v358 = vshrl.u32 %v357, 7
      %v359 = vsub.s32 0, %v358
      %v360 = vrot.slane %v355, %v359
      %v378 = vunpack.c.l.b16 %v339
      %v379 = vunpack.c.l.b16 %v340
      %v380 = vunpack.c.l.b16 %v341
      %v381 = vunpack.c.l.b16 %v342
      %v382 = vunpack.c.l.b16 %v343
      %v383 = vunpack.c.l.b16 %v344
      %v384 = vunpack.c.l.b16 %v345
      %v385 = vunpack.c.l.b16 %v346
      %v386 = vunpack.c.l.b16 %v347
      %v387 = vunpack.c.l.b16 %v348
      %v388 = vunpack.c.l.b16 %v349
      %v389 = vunpack.c.l.b16 %v350
      %v390 = vunpack.c.l.b16 %v351
      %v391 = vunpack.c.l.b16 %v352
      %v392 = vunpack.c.l.b16 %v353
      %v393 = vunpack.c.l.b16 %v354
      %v394 = vpack.c.b16 %v379, %v378
      %v395 = vpack.c.b16 %v381, %v380
      %v396 = vpack.c.b16 %v383, %v382
      %v397 = vpack.c.b16 %v385, %v384
      %v398 = vpack.c.b16 %v387, %v386
      %v399 = vpack.c.b16 %v389, %v388
      %v400 = vpack.c.b16 %v391, %v390
      %v401 = vpack.c.b16 %v393, %v392
      %410 = vmatprep.subr.bf16.mxu0 0
      %411 = vmatpush1.bf16.msra.mxu0 %v394
      %412 = vmatprep.subr.bf16.mxu0 0
      %413 = vmatpush1.bf16.msra.mxu0 %v395
      %414 = vmatprep.subr.bf16.mxu0 0
      %415 = vmatpush1.bf16.msra.mxu0 %v396
      %416 = vmatprep.subr.bf16.mxu0 0
      %417 = vmatpush1.bf16.msra.mxu0 %v397
      %418 = vmatprep.subr.bf16.mxu0 0
      %419 = vmatpush1.bf16.msra.mxu0 %v398
      %420 = vmatprep.subr.bf16.mxu0 0
      %421 = vmatpush1.bf16.msra.mxu0 %v399
      %422 = vmatprep.subr.bf16.mxu0 0
      %423 = vmatpush1.bf16.msra.mxu0 %v400
      %424 = vmatprep.subr.bf16.mxu0 0
      %425 = vmatpush1.bf16.msra.mxu0 %v401
      %426 = vmatprep.subr.bf16.mxu0 0
      %427 = vmatpush1.bf16.msra.mxu0 0
      %428 = vmatprep.subr.bf16.mxu0 0
      %429 = vmatpush1.bf16.msra.mxu0 0
      %430 = vmatprep.subr.bf16.mxu0 0
      %431 = vmatpush1.bf16.msra.mxu0 0
      %432 = vmatprep.subr.bf16.mxu0 0
      %433 = vmatpush1.bf16.msra.mxu0 0
      %434 = vmatprep.subr.bf16.mxu0 0
      %435 = vmatpush1.bf16.msra.mxu0 0
      %436 = vmatprep.subr.bf16.mxu0 0
      %437 = vmatpush1.bf16.msra.mxu0 0
      %438 = vmatprep.subr.bf16.mxu0 0
      %439 = vmatpush1.bf16.msra.mxu0 0
      %440 = vmatprep.subr.bf16.mxu0 0
      %441 = vmatpush1.bf16.msra.mxu0 0
      %442 = vmatprep.mubr.bf16.mxu0 0
      %443 = vmatmul.mubr.bf16.gmra.mrb[0].mxu0 %v338
      %v444 = vpop.f32.mrb[0].mxu0
      %v445 = vadd.f32 %v360, %v444
      %v446 = vpop.f32.mrb[0].mxu0
      %v447 = vpop.f32.mrb[0].mxu0
      %v448 = vpop.f32.mrb[0].mxu0
      %449 = vdwg.mxu0
      %450 = vst [vmem:[%s219] sm:$0xff] %v445
      %p451 = scmp.lt.s32.totalorder %s16, 1
      %s452 = scalar_select %p451, %s16, 1
      %s453 = smul.addr %s452, 8
      %s454 = scalar_lea.vmem %s5, %s453
      // Predicated region
      $region41: #{feed_forward.1} parent=39 // pred_check
        %p455 = pneg %p144
      $region42: #{feed_forward.1} parent=39 // pred_check_branch
        %457 = sbr.rel (%p455) target = $region44
      $region43: #{feed_forward.1} parent=39 // pred_region
        _
      $region44: #{feed_forward.1} parent=39 // pred_fallthru
        _
    $region40: #{feed_forward.1} parent=5 // pred_fallthru
      _
    %p458 = scmp.le.s32.totalorder 2, %s11
    // Predicated region
    $region45: #{feed_forward.1} parent=5 // pred_check
      %p459 = pneg %p458
    $region46: #{feed_forward.1} parent=5 // pred_check_branch
      %461 = sbr.rel (%p459) target = $region48
    $region47: #{feed_forward.1} parent=5 // pred_region
      %s462 = ssub.s32 %s11, 2
      // Predicated region
      $region49: #{feed_forward.1} parent=47 // pred_check
        %p463 = pneg %p150
      $region50: #{feed_forward.1} parent=47 // pred_check_branch
        %465 = sbr.rel (%p463) target = $region52
      $region51: #{feed_forward.1} parent=47 // pred_region
        %p466 = scmp.lt.s32.totalorder %s17, 1
        %s467 = scalar_select %p466, %s17, 1
        %s468 = smul.addr %s467, 8
        %s469 = scalar_lea.vmem %s5, %s468
      $region52: #{feed_forward.1} parent=47 // pred_fallthru
        _
    $region48: #{feed_forward.1} parent=5 // pred_fallthru
      _
  $region6: #{feed_forward.1} parent=0 // loop_footer
    %s15 = sadd.s32 1, %s11
  $region7: #{feed_forward.1} parent=0 // loop_footer_branch
    %10 = sbr.rel target = $region3
  $region8: #{feed_forward.1} parent=0 // loop_exit
    _

// kernel: feed_forward.1
$region0: #{feed_forward.1}
  #allocation0 [shape = 'u32[]', space=smem, size = 0x4, offset = 0x4, fixed_abs, tag = 'smem constant byte address 0x4 - core index']
  #allocation1 [shape = 'u32[144,128]{1,0:T(1,128)}', space=vmem, size = 0x12000, scoped, tag = 'internal scratch']
  %s0 = inlined_call_operand.vmem [shape: bf16[16,128], index: 0, kind: input, shape index: {}]
  %s1 = inlined_call_operand.vmem [shape: bf16[128,128], index: 1, kind: input, shape index: {}]
  %s2 = inlined_call_operand.vmem [shape: f32[1,128], index: 2, kind: input, shape index: {}]
  %s3 = inlined_call_operand.vmem [shape: bf16[128,128], index: 3, kind: input, shape index: {}]
  %s4 = inlined_call_operand.vmem [shape: f32[1,128], index: 4, kind: input, shape index: {}]
  %s5 = inlined_call_operand.vmem [shape: f32[16,128], index: 5, kind: output, shape index: {}]
  %s6 = sld [smem:[#allocation0]]
  $region53: #{feed_forward.1} parent=0
    _
  %s8 = ssub.s32 1, %s6
  %s9 = scalar_select 0, %s8, %s6
  loop: start=0, step=1, limit=4
  $region2: #{feed_forward.1} parent=0 // loop_pre_header
    _
  $region3: #{feed_forward.1} parent=0 // loop_header
    %s11 = sphi 0, %s15
    %p12 = scmp.ge.s32.totalorder %s11, 4
    %s21 = sphi 0, %s23
    %s24 = sphi 0, %s21
    %s25 = sphi 0, %s24
    %s41 = sphi 0, %s25
    %s45 = sphi 0, %s45
    %s47 = sphi 0, %s45
    %s48 = sphi 0, %s47
    %s62 = sphi 0, %s48
    %s66 = sphi 0, %s66
    %s68 = sphi 0, %s66
    %s69 = sphi 0, %s68
    %s83 = sphi 0, %s69
    %s87 = sphi 0, %s87
    %s89 = sphi 0, %s87
    %s90 = sphi 0, %s89
    %s104 = sphi 0, %s90
    %s108 = sphi 0, %s108
    %s110 = sphi 0, %s108
    %s111 = sphi 0, %s110
    %s125 = sphi 0, %s111
    %s131 = sphi 0, %s133
    %s134 = sphi 0, %s131
    %s135 = sphi 0, %s134
    %s151 = sphi 0, %s135
  $region4: #{feed_forward.1} parent=0 // loop_header_branch
    %14 = sbr.rel (%p12) target = $region8
  $region5: #{feed_forward.1} parent=0 // loop_body
    %s16 = ssub.s32 %s11, 1
    %s17 = ssub.s32 %s11, 2
    %s18 = sadd.s32 %s11, 1
    %s19 = ssub.s32 %s11, %s18
    %p20 = scmp.eq.s32.totalorder %s19, 0
    %s22 = sadd.s32 %s21, 1
    %s23 = scalar_select %p20, %s21, %s22
    %p26 = pneg %p20
    %p27 = scmp.eq.s32.totalorder %s11, 1
    %p28 = por %p26, %p27
    %p29 = scmp.ne.s32.totalorder %s21, %s24
    %p30 = scmp.eq.s32.totalorder %s11, 0
    %p31 = por %p29, %p30
    %p32 = scmp.ne.s32.totalorder %s21, %s24
    %p33 = scmp.eq.s32.totalorder %s16, 1
    %p34 = por %p32, %p33
    %p35 = scmp.ne.s32.totalorder %s24, %s25
    %p36 = scmp.eq.s32.totalorder %s16, 0
    %p37 = por %p35, %p36
    %p38 = scmp.ne.s32.totalorder %s24, %s25
    %p39 = scmp.eq.s32.totalorder %s17, 1
    %p40 = por %p38, %p39
    %p42 = scmp.ne.s32.totalorder %s25, %s41
    %p43 = scmp.eq.s32.totalorder %s17, 0
    %p44 = por %p42, %p43
    %s46 = sadd.s32 %s45, 1
    %p49 = scmp.eq.s32.totalorder %s11, 1
    %p50 = scmp.ne.s32.totalorder %s45, %s47
    %p51 = scmp.eq.s32.totalorder %s11, 0
    %p52 = por %p50, %p51
    %p53 = scmp.ne.s32.totalorder %s45, %s47
    %p54 = scmp.eq.s32.totalorder %s16, 1
    %p55 = por %p53, %p54
    %p56 = scmp.ne.s32.totalorder %s47, %s48
    %p57 = scmp.eq.s32.totalorder %s16, 0
    %p58 = por %p56, %p57
    %p59 = scmp.ne.s32.totalorder %s47, %s48
    %p60 = scmp.eq.s32.totalorder %s17, 1
    %p61 = por %p59, %p60
    %p63 = scmp.ne.s32.totalorder %s48, %s62
    %p64 = scmp.eq.s32.totalorder %s17, 0
    %p65 = por %p63, %p64
    %s67 = sadd.s32 %s66, 1
    %p70 = scmp.eq.s32.totalorder %s11, 1
    %p71 = scmp.ne.s32.totalorder %s66, %s68
    %p72 = scmp.eq.s32.totalorder %s11, 0
    %p73 = por %p71, %p72
    %p74 = scmp.ne.s32.totalorder %s66, %s68
    %p75 = scmp.eq.s32.totalorder %s16, 1
    %p76 = por %p74, %p75
    %p77 = scmp.ne.s32.totalorder %s68, %s69
    %p78 = scmp.eq.s32.totalorder %s16, 0
    %p79 = por %p77, %p78
    %p80 = scmp.ne.s32.totalorder %s68, %s69
    %p81 = scmp.eq.s32.totalorder %s17, 1
    %p82 = por %p80, %p81
    %p84 = scmp.ne.s32.totalorder %s69, %s83
    %p85 = scmp.eq.s32.totalorder %s17, 0
    %p86 = por %p84, %p85
    %s88 = sadd.s32 %s87, 1
    %p91 = scmp.eq.s32.totalorder %s11, 1
    %p92 = scmp.ne.s32.totalorder %s87, %s89
    %p93 = scmp.eq.s32.totalorder %s11, 0
    %p94 = por %p92, %p93
    %p95 = scmp.ne.s32.totalorder %s87, %s89
    %p96 = scmp.eq.s32.totalorder %s16, 1
    %p97 = por %p95, %p96
    %p98 = scmp.ne.s32.totalorder %s89, %s90
    %p99 = scmp.eq.s32.totalorder %s16, 0
    %p100 = por %p98, %p99
    %p101 = scmp.ne.s32.totalorder %s89, %s90
    %p102 = scmp.eq.s32.totalorder %s17, 1
    %p103 = por %p101, %p102
    %p105 = scmp.ne.s32.totalorder %s90, %s104
    %p106 = scmp.eq.s32.totalorder %s17, 0
    %p107 = por %p105, %p106
    %s109 = sadd.s32 %s108, 1
    %p112 = scmp.eq.s32.totalorder %s11, 1
    %p113 = scmp.ne.s32.totalorder %s108, %s110
    %p114 = scmp.eq.s32.totalorder %s11, 0
    %p115 = por %p113, %p114
    %p116 = scmp.ne.s32.totalorder %s108, %s110
    %p117 = scmp.eq.s32.totalorder %s16, 1
    %p118 = por %p116, %p117
    %p119 = scmp.ne.s32.totalorder %s110, %s111
    %p120 = scmp.eq.s32.totalorder %s16, 0
    %p121 = por %p119, %p120
    %p122 = scmp.ne.s32.totalorder %s110, %s111
    %p123 = scmp.eq.s32.totalorder %s17, 1
    %p124 = por %p122, %p123
    %p126 = scmp.ne.s32.totalorder %s111, %s125
    %p127 = scmp.eq.s32.totalorder %s17, 0
    %p128 = por %p126, %p127
    %s129 = ssub.s32 %s11, %s18
    %p130 = scmp.eq.s32.totalorder %s129, 0
    %s132 = sadd.s32 %s131, 1
    %s133 = scalar_select %p130, %s131, %s132
    %p136 = pneg %p130
    %p137 = scmp.eq.s32.totalorder %s11, 1
    %p138 = por %p136, %p137
    %p139 = scmp.ne.s32.totalorder %s131, %s134
    %p140 = scmp.eq.s32.totalorder %s11, 0
    %p141 = por %p139, %p140
    %p142 = scmp.ne.s32.totalorder %s131, %s134
    %p143 = scmp.eq.s32.totalorder %s16, 1
    %p144 = por %p142, %p143
    %p145 = scmp.ne.s32.totalorder %s134, %s135
    %p146 = scmp.eq.s32.totalorder %s16, 0
    %p147 = por %p145, %p146
    %p148 = scmp.ne.s32.totalorder %s134, %s135
    %p149 = scmp.eq.s32.totalorder %s17, 1
    %p150 = por %p148, %p149
    %p152 = scmp.ne.s32.totalorder %s135, %s151
    %p153 = scmp.eq.s32.totalorder %s17, 0
    %p154 = por %p152, %p153
    %p155 = scmp.le.s32.totalorder 1, %s11
    %p156 = scmp.lt.s32.totalorder %s11, 3
    %p157 = pnand %p155, %p156
    %p158 = pneg %p157
    // Predicated region
    $region9: #{feed_forward.1} parent=5 // pred_check
      _
    $region10: #{feed_forward.1} parent=5 // pred_check_branch
      %160 = sbr.rel (%p157) target = $region12
    $region11: #{feed_forward.1} parent=5 // pred_region
      %s161 = ssub.s32 %s11, 1
      // Predicated region
      $region13: #{feed_forward.1} parent=11 // pred_check
        %p162 = pneg %p58
      $region14: #{feed_forward.1} parent=11 // pred_check_branch
        %164 = sbr.rel (%p162) target = $region16
      $region15: #{feed_forward.1} parent=11 // pred_region
        _
      $region16: #{feed_forward.1} parent=11 // pred_fallthru
        _
      // Predicated region
      $region17: #{feed_forward.1} parent=11 // pred_check
        %p165 = pneg %p79
      $region18: #{feed_forward.1} parent=11 // pred_check_branch
        %167 = sbr.rel (%p165) target = $region20
      $region19: #{feed_forward.1} parent=11 // pred_region
        _
      $region20: #{feed_forward.1} parent=11 // pred_fallthru
        _
      // Predicated region
      $region21: #{feed_forward.1} parent=11 // pred_check
        %p168 = pneg %p100
      $region22: #{feed_forward.1} parent=11 // pred_check_branch
        %170 = sbr.rel (%p168) target = $region24
      $region23: #{feed_forward.1} parent=11 // pred_region
        _
      $region24: #{feed_forward.1} parent=11 // pred_fallthru
        _
      // Predicated region
      $region25: #{feed_forward.1} parent=11 // pred_check
        %p171 = pneg %p121
      $region26: #{feed_forward.1} parent=11 // pred_check_branch
        %173 = sbr.rel (%p171) target = $region28
      $region27: #{feed_forward.1} parent=11 // pred_region
        _
      $region28: #{feed_forward.1} parent=11 // pred_fallthru
        _
    $region12: #{feed_forward.1} parent=5 // pred_fallthru
      _
    %p174 = scmp.lt.s32.totalorder %s11, 2
    // Predicated region
    $region29: #{feed_forward.1} parent=5 // pred_check
      %p175 = pneg %p174
    $region30: #{feed_forward.1} parent=5 // pred_check_branch
      %177 = sbr.rel (%p175) target = $region32
    $region31: #{feed_forward.1} parent=5 // pred_region
      // Predicated region
      $region33: #{feed_forward.1} parent=31 // pred_check
        %p178 = pneg %p31
      $region34: #{feed_forward.1} parent=31 // pred_check_branch
        %180 = sbr.rel (%p178) target = $region36
      $region35: #{feed_forward.1} parent=31 // pred_region
        %p181 = scmp.lt.s32.totalorder %s11, 1
        %s182 = scalar_select %p181, %s11, 1
        %s183 = smul.addr %s182, 4
        %s184 = scalar_lea.vmem %s0, %s183
      $region36: #{feed_forward.1} parent=31 // pred_fallthru
        _
    $region32: #{feed_forward.1} parent=5 // pred_fallthru
      _
    %p185 = scmp.le.s32.totalorder 1, %s11
    %p186 = scmp.lt.s32.totalorder %s11, 3
    %p187 = pnand %p185, %p186
    %p188 = pneg %p187
    // Predicated region
    $region37: #{feed_forward.1} parent=5 // pred_check
      _
    $region38: #{feed_forward.1} parent=5 // pred_check_branch
      %190 = sbr.rel (%p187) target = $region40
    $region39: #{feed_forward.1} parent=5 // pred_region
      %s191 = ssub.s32 %s11, 1
      %p192 = scmp.lt.s32.totalorder %s16, 1
      %s193 = scalar_select %p192, %s16, 1
      %s194 = smul.addr %s193, 4
      %s195 = scalar_lea.vmem %s0, %s194
      %p196 = pneg %p37
      %p197 = pneg %p34
      %p198 = pneg %p58
      %p199 = pneg %p55
      %p200 = pneg %p79
      %p201 = pneg %p76
      %p202 = pneg %p100
      %p203 = pneg %p97
      %p204 = pneg %p121
      %p205 = pneg %p118
      %p206 = pneg %p147
      %p207 = pneg %p144
      %p208 = scmp.lt.s32.totalorder %s16, 1
      %s209 = scalar_select %p208, %s16, 1
      %s210 = smul.addr %s209, 8
      %s211 = scalar_lea.vmem %s5, %s210
      %p212 = scmp.lt.s32.totalorder %s16, 1
      %s213 = scalar_select %p212, %s16, 1
      %s214 = smul.addr %s213, 4
      %s215 = scalar_lea.vmem %s0, %s214
      %p216 = scmp.lt.s32.totalorder %s16, 1
      %s217 = scalar_select %p216, %s16, 1
      %s218 = smul.addr %s217, 8
      %s219 = scalar_lea.vmem %s5, %s218
      %v221 = vld [vmem:[%s215] sm:$0xf]
      %v222 = vld [vmem:[%s1] sm:$0xf]
      %v223 = vld [vmem:[%s1 + $0x4] sm:$0xf]
      %v224 = vld [vmem:[%s1 + $0x8] sm:$0xf]
      %v225 = vld [vmem:[%s1 + $0xc] sm:$0xf]
      %v226 = vld [vmem:[%s1 + $0x10] sm:$0xf]
      %v227 = vld [vmem:[%s1 + $0x14] sm:$0xf]
      %v228 = vld [vmem:[%s1 + $0x18] sm:$0xf]
      %v229 = vld [vmem:[%s1 + $0x1c] sm:$0xf]
      %v230 = vld [vmem:[%s1 + $0x20] sm:$0xf]
      %v231 = vld [vmem:[%s1 + $0x24] sm:$0xf]
      %v232 = vld [vmem:[%s1 + $0x28] sm:$0xf]
      %v233 = vld [vmem:[%s1 + $0x2c] sm:$0xf]
      %v234 = vld [vmem:[%s1 + $0x30] sm:$0xf]
      %v235 = vld [vmem:[%s1 + $0x34] sm:$0xf]
      %v236 = vld [vmem:[%s1 + $0x38] sm:$0xf]
      %v237 = vld [vmem:[%s1 + $0x3c] sm:$0xf]
      %v238 = vld [vmem:[%s2] sm:$0x1]
      %v240 = vlaneseq
      %v241 = vshrl.u32 %v240, 7
      %v242 = vsub.s32 0, %v241
      %v243 = vrot.slane %v238, %v242
      %v261 = vunpack.c.l.b16 %v222
      %v262 = vunpack.c.l.b16 %v223
      %v263 = vunpack.c.l.b16 %v224
      %v264 = vunpack.c.l.b16 %v225
      %v265 = vunpack.c.l.b16 %v226
      %v266 = vunpack.c.l.b16 %v227
      %v267 = vunpack.c.l.b16 %v228
      %v268 = vunpack.c.l.b16 %v229
      %v269 = vunpack.c.l.b16 %v230
      %v270 = vunpack.c.l.b16 %v231
      %v271 = vunpack.c.l.b16 %v232
      %v272 = vunpack.c.l.b16 %v233
      %v273 = vunpack.c.l.b16 %v234
      %v274 = vunpack.c.l.b16 %v235
      %v275 = vunpack.c.l.b16 %v236
      %v276 = vunpack.c.l.b16 %v237
      %v277 = vpack.c.b16 %v262, %v261
      %v278 = vpack.c.b16 %v264, %v263
      %v279 = vpack.c.b16 %v266, %v265
      %v280 = vpack.c.b16 %v268, %v267
      %v281 = vpack.c.b16 %v270, %v269
      %v282 = vpack.c.b16 %v272, %v271
      %v283 = vpack.c.b16 %v274, %v273
      %v284 = vpack.c.b16 %v276, %v275
      %293 = vmatprep.subr.bf16.mxu0 0
      %294 = vmatpush1.bf16.msra.mxu0 %v277
      %295 = vmatprep.subr.bf16.mxu0 0
      %296 = vmatpush1.bf16.msra.mxu0 %v278
      %297 = vmatprep.subr.bf16.mxu0 0
      %298 = vmatpush1.bf16.msra.mxu0 %v279
      %299 = vmatprep.subr.bf16.mxu0 0
      %300 = vmatpush1.bf16.msra.mxu0 %v280
      %301 = vmatprep.subr.bf16.mxu0 0
      %302 = vmatpush1.bf16.msra.mxu0 %v281
      %303 = vmatprep.subr.bf16.mxu0 0
      %304 = vmatpush1.bf16.msra.mxu0 %v282
      %305 = vmatprep.subr.bf16.mxu0 0
      %306 = vmatpush1.bf16.msra.mxu0 %v283
      %307 = vmatprep.subr.bf16.mxu0 0
      %308 = vmatpush1.bf16.msra.mxu0 %v284
      %309 = vmatprep.subr.bf16.mxu0 0
      %310 = vmatpush1.bf16.msra.mxu0 0
      %311 = vmatprep.subr.bf16.mxu0 0
      %312 = vmatpush1.bf16.msra.mxu0 0
      %313 = vmatprep.subr.bf16.mxu0 0
      %314 = vmatpush1.bf16.msra.mxu0 0
      %315 = vmatprep.subr.bf16.mxu0 0
      %316 = vmatpush1.bf16.msra.mxu0 0
      %317 = vmatprep.subr.bf16.mxu0 0
      %318 = vmatpush1.bf16.msra.mxu0 0
      %319 = vmatprep.subr.bf16.mxu0 0
      %320 = vmatpush1.bf16.msra.mxu0 0
      %321 = vmatprep.subr.bf16.mxu0 0
      %322 = vmatpush1.bf16.msra.mxu0 0
      %323 = vmatprep.subr.bf16.mxu0 0
      %324 = vmatpush1.bf16.msra.mxu0 0
      %325 = vmatprep.mubr.bf16.mxu0 0
      %326 = vmatmul.mubr.bf16.gmra.mrb[0].mxu0 %v221
      %v327 = vpop.f32.mrb[0].mxu0
      %v328 = vadd.f32 %v243, %v327
      %v329 = vpop.f32.mrb[0].mxu0
      %v330 = vpop.f32.mrb[0].mxu0
      %v331 = vpop.f32.mrb[0].mxu0
      %332 = vdwg.mxu0
      %v333 = vmul.f32 %v328, 0.5
      %v334 = vmul.f32 %v328, 0.70710677
      %v335 = verf.f32.pop %v334
      %v336 = vadd.f32 %v335, 1.0
      %v337 = vmul.f32 %v333, %v336
      %v338 = vpack.c.bf16 %v337, %v337
      %v339 = vld [vmem:[%s3] sm:$0xf]
      %v340 = vld [vmem:[%s3 + $0x4] sm:$0xf]
      %v341 = vld [vmem:[%s3 + $0x8] sm:$0xf]
      %v342 = vld [vmem:[%s3 + $0xc] sm:$0xf]
      %v343 = vld [vmem:[%s3 + $0x10] sm:$0xf]
      %v344 = vld [vmem:[%s3 + $0x14] sm:$0xf]
      %v345 = vld [vmem:[%s3 + $0x18] sm:$0xf]
      %v346 = vld [vmem:[%s3 + $0x1c] sm:$0xf]
      %v347 = vld [vmem:[%s3 + $0x20] sm:$0xf]
      %v348 = vld [vmem:[%s3 + $0x24] sm:$0xf]
      %v349 = vld [vmem:[%s3 + $0x28] sm:$0xf]
      %v350 = vld [vmem:[%s3 + $0x2c] sm:$0xf]
      %v351 = vld [vmem:[%s3 + $0x30] sm:$0xf]
      %v352 = vld [vmem:[%s3 + $0x34] sm:$0xf]
      %v353 = vld [vmem:[%s3 + $0x38] sm:$0xf]
      %v354 = vld [vmem:[%s3 + $0x3c] sm:$0xf]
      %v355 = vld [vmem:[%s4] sm:$0x1]
      %v357 = vlaneseq
      %v358 = vshrl.u32 %v357, 7
      %v359 = vsub.s32 0, %v358
      %v360 = vrot.slane %v355, %v359
      %v378 = vunpack.c.l.b16 %v339
      %v379 = vunpack.c.l.b16 %v340
      %v380 = vunpack.c.l.b16 %v341
      %v381 = vunpack.c.l.b16 %v342
      %v382 = vunpack.c.l.b16 %v343
      %v383 = vunpack.c.l.b16 %v344
      %v384 = vunpack.c.l.b16 %v345
      %v385 = vunpack.c.l.b16 %v346
      %v386 = vunpack.c.l.b16 %v347
      %v387 = vunpack.c.l.b16 %v348
      %v388 = vunpack.c.l.b16 %v349
      %v389 = vunpack.c.l.b16 %v350
      %v390 = vunpack.c.l.b16 %v351
      %v391 = vunpack.c.l.b16 %v352
      %v392 = vunpack.c.l.b16 %v353
      %v393 = vunpack.c.l.b16 %v354
      %v394 = vpack.c.b16 %v379, %v378
      %v395 = vpack.c.b16 %v381, %v380
      %v396 = vpack.c.b16 %v383, %v382
      %v397 = vpack.c.b16 %v385, %v384
      %v398 = vpack.c.b16 %v387, %v386
      %v399 = vpack.c.b16 %v389, %v388
      %v400 = vpack.c.b16 %v391, %v390
      %v401 = vpack.c.b16 %v393, %v392
      %410 = vmatprep.subr.bf16.mxu0 0
      %411 = vmatpush1.bf16.msra.mxu0 %v394
      %412 = vmatprep.subr.bf16.mxu0 0
      %413 = vmatpush1.bf16.msra.mxu0 %v395
      %414 = vmatprep.subr.bf16.mxu0 0
      %415 = vmatpush1.bf16.msra.mxu0 %v396
      %416 = vmatprep.subr.bf16.mxu0 0
      %417 = vmatpush1.bf16.msra.mxu0 %v397
      %418 = vmatprep.subr.bf16.mxu0 0
      %419 = vmatpush1.bf16.msra.mxu0 %v398
      %420 = vmatprep.subr.bf16.mxu0 0
      %421 = vmatpush1.bf16.msra.mxu0 %v399
      %422 = vmatprep.subr.bf16.mxu0 0
      %423 = vmatpush1.bf16.msra.mxu0 %v400
      %424 = vmatprep.subr.bf16.mxu0 0
      %425 = vmatpush1.bf16.msra.mxu0 %v401
      %426 = vmatprep.subr.bf16.mxu0 0
      %427 = vmatpush1.bf16.msra.mxu0 0
      %428 = vmatprep.subr.bf16.mxu0 0
      %429 = vmatpush1.bf16.msra.mxu0 0
      %430 = vmatprep.subr.bf16.mxu0 0
      %431 = vmatpush1.bf16.msra.mxu0 0
      %432 = vmatprep.subr.bf16.mxu0 0
      %433 = vmatpush1.bf16.msra.mxu0 0
      %434 = vmatprep.subr.bf16.mxu0 0
      %435 = vmatpush1.bf16.msra.mxu0 0
      %436 = vmatprep.subr.bf16.mxu0 0
      %437 = vmatpush1.bf16.msra.mxu0 0
      %438 = vmatprep.subr.bf16.mxu0 0
      %439 = vmatpush1.bf16.msra.mxu0 0
      %440 = vmatprep.subr.bf16.mxu0 0
      %441 = vmatpush1.bf16.msra.mxu0 0
      %442 = vmatprep.mubr.bf16.mxu0 0
      %443 = vmatmul.mubr.bf16.gmra.mrb[0].mxu0 %v338
      %v444 = vpop.f32.mrb[0].mxu0
      %v445 = vadd.f32 %v360, %v444
      %v446 = vpop.f32.mrb[0].mxu0
      %v447 = vpop.f32.mrb[0].mxu0
      %v448 = vpop.f32.mrb[0].mxu0
      %449 = vdwg.mxu0
      %450 = vst [vmem:[%s219] sm:$0xff] %v445
      %p451 = scmp.lt.s32.totalorder %s16, 1
      %s452 = scalar_select %p451, %s16, 1
      %s453 = smul.addr %s452, 8
      %s454 = scalar_lea.vmem %s5, %s453
      // Predicated region
      $region41: #{feed_forward.1} parent=39 // pred_check
        %p455 = pneg %p144
      $region42: #{feed_forward.1} parent=39 // pred_check_branch
        %457 = sbr.rel (%p455) target = $region44
      $region43: #{feed_forward.1} parent=39 // pred_region
        _
      $region44: #{feed_forward.1} parent=39 // pred_fallthru
        _
    $region40: #{feed_forward.1} parent=5 // pred_fallthru
      _
    %p458 = scmp.le.s32.totalorder 2, %s11
    // Predicated region
    $region45: #{feed_forward.1} parent=5 // pred_check
      %p459 = pneg %p458
    $region46: #{feed_forward.1} parent=5 // pred_check_branch
      %461 = sbr.rel (%p459) target = $region48
    $region47: #{feed_forward.1} parent=5 // pred_region
      %s462 = ssub.s32 %s11, 2
      // Predicated region
      $region49: #{feed_forward.1} parent=47 // pred_check
        %p463 = pneg %p150
      $region50: #{feed_forward.1} parent=47 // pred_check_branch
        %465 = sbr.rel (%p463) target = $region52
      $region51: #{feed_forward.1} parent=47 // pred_region
        %p466 = scmp.lt.s32.totalorder %s17, 1
        %s467 = scalar_select %p466, %s17, 1
        %s468 = smul.addr %s467, 8
        %s469 = scalar_lea.vmem %s5, %s468
      $region52: #{feed_forward.1} parent=47 // pred_fallthru
        _
    $region48: #{feed_forward.1} parent=5 // pred_fallthru
      _
  $region6: #{feed_forward.1} parent=0 // loop_footer
    %s15 = sadd.s32 1, %s11
  $region7: #{feed_forward.1} parent=0 // loop_footer_branch
    %10 = sbr.rel target = $region3
  $region8: #{feed_forward.1} parent=0 // loop_exit
    _

</llo_original>
